<compile_context>
chip_gen: v5e
topology: v5e:2x2
jax: 0.10.0
libtpu: 0.0.40
codegen_flags: <defaults>
</compile_context>

<pallas_src>
import functools
import math

import jax
import jax.numpy as jnp
from jax.experimental import pallas as pl
from jax.experimental.pallas import tpu as pltpu

# ----------------------------- config (small shapes implied by the module) -------------
N = 2              # batch
L = 8              # sequence length (value_len == key_len == query_len)
E = 32             # embed_size
HEADS = 4
HEAD_DIM = E // HEADS
FWD_EXP = 4
HIDDEN = FWD_EXP * E   # 128
LN_EPS = 1e-5


def _layer_norm(x, gamma, beta):
    mu = jnp.mean(x, axis=-1, keepdims=True)
    var = jnp.mean((x - mu) ** 2, axis=-1, keepdims=True)
    return (x - mu) * jax.lax.rsqrt(var + LN_EPS) * gamma + beta


# ----------------------------- fused whole-batch kernel --------------------------------
def _transformer_block_kernel(
    acts_ref,      # (3, T, E): [value, key, query], token-flattened (T = N*L)
    qh_ref,        # (H, T, hd): raw query, head-major (query projection is dead code)
    bias_ref,      # (T, T): block-diagonal additive mask bias (0 keep / -1e20 drop)
    w_att_ref,     # (3, E, E): [wk, wv, wo^T]  (wk/wv in native PyTorch (out,in) layout)
    w_ff_ref,      # (2, E, HIDDEN): [w1^T, w2]
    vec_ref,       # (8, 128) slab: bf1 | bo | g1 | b1 | bf2 | g2 | b2
    o_ref,         # (T, E) output
    *, tokens, embed, heads, head_dim, hidden,
):
    f32 = jnp.float32

    acts = acts_ref[...]                         # (3, T, E)
    v_all, k_all, q_all = acts[0], acts[1], acts[2]
    w_att = w_att_ref[...]                       # (3, E, E)
    w_ff = w_ff_ref[...]                         # (2, E, HIDDEN)
    vec = vec_ref[...]                           # (8, 128) packed small vectors

    bf1 = vec[0:1, :hidden]                      # (1, HIDDEN)
    bo = vec[1:2, :embed]                        # (1, E)
    g1 = vec[2:3, :embed]
    b1 = vec[3:4, :embed]
    bf2 = vec[4:5, :embed]
    g2 = vec[5:6, :embed]
    b2 = vec[6:7, :embed]

    # ---- attention ---------------------------------------------------------------
    # K/V projections for ALL tokens at once, feature-major, so the head split is a
    # free sublane reshape and the weights are consumed untransposed.
    kh = jnp.einsum("oe,te->ot", w_att[0], k_all,
                    preferred_element_type=f32).reshape(heads, head_dim, tokens)
    vh = jnp.einsum("oe,te->ot", w_att[1], v_all,
                    preferred_element_type=f32).reshape(heads, head_dim, tokens)

    # softmax(energy / sqrt(E)): scale the raw (head-split) query once
    qh = qh_ref[...] * (1.0 / math.sqrt(embed))           # (H, T, hd)

    # One head-batched chain over the merged token axis.  The block-diagonal bias makes
    # every cross-batch attention weight exactly 0.0 after softmax (exp underflow), so
    # this is numerically identical to per-batch attention.
    logits = jnp.einsum("hqd,hdk->hqk", qh, kh,
                        preferred_element_type=f32) + bias_ref[...][None, :, :]
    logits = logits - jnp.max(logits, axis=-1, keepdims=True)
    p = jnp.exp(logits)
    attn = p / jnp.sum(p, axis=-1, keepdims=True)          # exact divide (correctness fix)
    out_h = jnp.einsum("hqk,hdk->hqd", attn, vh,
                       preferred_element_type=f32)          # (H, T, hd)

    # fc_out folded per head: sum_h out_h[h] @ wo^T[h]  -> (T, E)
    wo_h = w_att[2].reshape(heads, head_dim, embed)         # (H, hd, E)
    attn_fc = jnp.sum(jnp.einsum("htd,hde->hte", out_h, wo_h,
                                 preferred_element_type=f32), axis=0) + bo

    # ---- residual + LayerNorm 1   (dropout -> identity) ---------------------------
    x = _layer_norm(attn_fc + q_all, g1, b1)

    # ---- feed-forward: Linear(E->4E) + ReLU + Linear(4E->E) -----------------------
    h1 = jnp.maximum(
        jnp.dot(x, w_ff[0], preferred_element_type=f32) + bf1, 0.0)        # (T, HIDDEN)
    ff = jnp.einsum("th,eh->te", h1, w_ff[1], preferred_element_type=f32) + bf2

    # ---- residual + LayerNorm 2   (dropout -> identity) ---------------------------
    o_ref[...] = _layer_norm(ff + x, g2, b2).astype(o_ref.dtype)


# ----------------------------- wrapper ---------------------------------------------------
def prepare_params(params):
    """One-time weight re-layout/packing for the kernel.  `wq` is dead code in the
    reference forward and is intentionally unused."""
    slab = jnp.zeros((8, 128), jnp.float32)
    slab = slab.at[0, :HIDDEN].set(params["bf1"].reshape(-1))
    slab = slab.at[1, :E].set(params["bo"].reshape(-1))
    slab = slab.at[2, :E].set(params["g1"].reshape(-1))
    slab = slab.at[3, :E].set(params["b1"].reshape(-1))
    slab = slab.at[4, :E].set(params["bf2"].reshape(-1))
    slab = slab.at[5, :E].set(params["g2"].reshape(-1))
    slab = slab.at[6, :E].set(params["b2"].reshape(-1))
    return {
        "w_att": jnp.stack([params["wk"], params["wv"], params["wo"].T], axis=0),  # (3,E,E)
        "w_ff": jnp.stack([params["w1"].T, params["w2"]], axis=0),                 # (2,E,HIDDEN)
        "vec": slab,                                                               # (8,128)
    }


@jax.jit
def transformer_block(value, key, query, mask, kp):
    n, l, e = query.shape
    t = n * l
    heads, head_dim = HEADS, HEAD_DIM

    # stacked token-flattened activations (lane axis = E)
    acts = jnp.stack([value.reshape(t, e), key.reshape(t, e), query.reshape(t, e)], axis=0)
    # raw query, head-major (H, T, hd): the query projection is dead code in the reference
    q_heads = query.reshape(t, heads, head_dim).transpose(1, 0, 2)

    # Block-diagonal additive mask bias over the merged token axis: within-batch entries
    # follow `mask` (0 -> keep, masked -> -1e20), cross-batch entries are always -1e20,
    # so the in-kernel softmax over all T keys equals per-batch softmax exactly.
    keep = jnp.einsum("ab,aqk->aqbk", jnp.eye(n, dtype=jnp.float32),
                      (mask != 0).astype(jnp.float32)).reshape(t, t)
    bias = jnp.where(keep > 0.5, 0.0, -1e20).astype(jnp.float32)

    kernel = functools.partial(
        _transformer_block_kernel,
        tokens=t, embed=e, heads=heads, head_dim=head_dim, hidden=HIDDEN)
    vmem = pl.BlockSpec(memory_space=pltpu.MemorySpace.VMEM)

    flops = (2 * 2 * t * e * e                      # K/V projections
             + 2 * 2 * heads * t * t * head_dim     # energy + weighted sum
             + 2 * heads * t * head_dim * e         # fc_out
             + 2 * 2 * t * e * HIDDEN)              # feed-forward
    transcendentals = heads * t * t + 2 * t         # exp + rsqrt
    bytes_accessed = 4 * (acts.size + q_heads.size + bias.size
                          + kp["w_att"].size + kp["w_ff"].size + kp["vec"].size + t * e)

    out2 = pl.pallas_call(
        kernel,
        out_shape=jax.ShapeDtypeStruct((t, e), jnp.float32),
        in_specs=[vmem] * 6,
        out_specs=vmem,
        cost_estimate=pl.CostEstimate(flops=flops, transcendentals=transcendentals,
                                      bytes_accessed=bytes_accessed),
    )(acts, q_heads, bias, kp["w_att"], kp["w_ff"], kp["vec"])
    return out2.reshape(n, l, e)


# ----------------------------- pure-JAX reference (for verification) ---------------------
def reference(value, key, query, mask, p):
    n, l, e = query.shape
    vp = (value @ p["wv"].T).reshape(n, l, HEADS, HEAD_DIM)
    kp_ = (key @ p["wk"].T).reshape(n, l, HEADS, HEAD_DIM)
    qh = query.reshape(n, l, HEADS, HEAD_DIM)          # raw query, as in the PyTorch code
    energy = jnp.einsum("nqhd,nkhd->nhqk", qh, kp_)
    energy = jnp.where(mask[:, None, :, :] == 0, -1e20, energy)
    attn = jax.nn.softmax(energy / math.sqrt(e), axis=3)
    out = jnp.einsum("nhql,nlhd->nqhd", attn, vp).reshape(n, l, e)
    out = out @ p["wo"].T + p["bo"]

    def ln(x, g, b):
        mu = jnp.mean(x, axis=-1, keepdims=True)
        var = jnp.mean((x - mu) ** 2, axis=-1, keepdims=True)
        return (x - mu) * jax.lax.rsqrt(var + LN_EPS) * g + b

    x = ln(out + query, p["g1"], p["b1"])
    ff = jnp.maximum(x @ p["w1"].T + p["bf1"], 0.0) @ p["w2"].T + p["bf2"]
    return ln(ff + x, p["g2"], p["b2"])


# ----------------------------- main -------------------------------------------------------
if __name__ == "__main__":
    root = jax.random.PRNGKey(0)
    keys = jax.random.split(root, 16)

    def init(k, shape, scale=0.1):
        return (scale * jax.random.normal(k, shape)).astype(jnp.float32)

    params = {
        "wv": init(keys[0], (E, E)),
        "wk": init(keys[1], (E, E)),
        "wq": init(keys[2], (E, E)),            # dead in the reference forward; kept for parity
        "wo": init(keys[3], (E, E)),
        "bo": init(keys[4], (1, E)),
        "g1": jnp.ones((1, E), jnp.float32),
        "b1": jnp.zeros((1, E), jnp.float32),
        "w1": init(keys[5], (HIDDEN, E)),
        "bf1": init(keys[6], (1, HIDDEN)),
        "w2": init(keys[7], (E, HIDDEN)),
        "bf2": init(keys[8], (1, E)),
        "g2": jnp.ones((1, E), jnp.float32),
        "b2": jnp.zeros((1, E), jnp.float32),
    }

    value = init(keys[9], (N, L, E), scale=1.0)
    key = init(keys[10], (N, L, E), scale=1.0)
    query = init(keys[11], (N, L, E), scale=1.0)
    # lower-triangular (causal) mask, 1 = keep, 0 = masked
    mask = jnp.tril(jnp.ones((L, L), jnp.float32))[None].repeat(N, axis=0)

    kparams = prepare_params(params)
    out = transformer_block(value, key, query, mask, kparams)
    out = jax.block_until_ready(out)

    ref = reference(value, key, query, mask, params)
    assert out.shape == (N, L, E)
    err = jnp.max(jnp.abs(out - ref))
    assert jnp.allclose(out, ref, atol=2e-4, rtol=2e-4), f"max abs err {err}"
    print("KERNEL_OK")
</pallas_src>

<mosaic_0001>
module attributes {stable_mosaic.version = 11 : i64} {
  func.func @_transformer_block_kernel(%arg0: memref<3x16x32xf32, #tpu.memory_space<vmem>>, %arg1: memref<4x16x8xf32, #tpu.memory_space<vmem>>, %arg2: memref<16x16xf32, #tpu.memory_space<vmem>>, %arg3: memref<3x32x32xf32, #tpu.memory_space<vmem>>, %arg4: memref<2x32x128xf32, #tpu.memory_space<vmem>>, %arg5: memref<8x128xf32, #tpu.memory_space<vmem>>, %arg6: memref<16x32xf32, #tpu.memory_space<vmem>>) attributes {dimension_semantics = [], scalar_prefetch = 0 : i64, scratch_operands = 0 : i64, tpu.core_type = #tpu.core_type<tc>} {
    %c0 = arith.constant 0 : index
    %c0_0 = arith.constant 0 : index
    %c0_1 = arith.constant 0 : index
    %0 = vector.load %arg0[%c0, %c0_0, %c0_1] : memref<3x16x32xf32, #tpu.memory_space<vmem>>, vector<3x16x32xf32>
    %1 = vector.extract_strided_slice %0 {offsets = [0, 0, 0], sizes = [1, 16, 32], strides = [1, 1, 1]} : vector<3x16x32xf32> to vector<1x16x32xf32>
    %2 = vector.shape_cast %1 : vector<1x16x32xf32> to vector<16x32xf32>
    %3 = vector.extract_strided_slice %0 {offsets = [1, 0, 0], sizes = [1, 16, 32], strides = [1, 1, 1]} : vector<3x16x32xf32> to vector<1x16x32xf32>
    %4 = vector.shape_cast %3 : vector<1x16x32xf32> to vector<16x32xf32>
    %5 = vector.extract_strided_slice %0 {offsets = [2, 0, 0], sizes = [1, 16, 32], strides = [1, 1, 1]} : vector<3x16x32xf32> to vector<1x16x32xf32>
    %6 = vector.shape_cast %5 : vector<1x16x32xf32> to vector<16x32xf32>
    %c0_2 = arith.constant 0 : index
    %c0_3 = arith.constant 0 : index
    %c0_4 = arith.constant 0 : index
    %7 = vector.load %arg3[%c0_2, %c0_3, %c0_4] : memref<3x32x32xf32, #tpu.memory_space<vmem>>, vector<3x32x32xf32>
    %c0_5 = arith.constant 0 : index
    %c0_6 = arith.constant 0 : index
    %c0_7 = arith.constant 0 : index
    %8 = vector.load %arg4[%c0_5, %c0_6, %c0_7] : memref<2x32x128xf32, #tpu.memory_space<vmem>>, vector<2x32x128xf32>
    %c0_8 = arith.constant 0 : index
    %c0_9 = arith.constant 0 : index
    %9 = vector.load %arg5[%c0_8, %c0_9] : memref<8x128xf32, #tpu.memory_space<vmem>>, vector<8x128xf32>
    %10 = vector.extract_strided_slice %9 {offsets = [0, 0], sizes = [1, 128], strides = [1, 1]} : vector<8x128xf32> to vector<1x128xf32>
    %11 = vector.extract_strided_slice %9 {offsets = [1, 0], sizes = [1, 32], strides = [1, 1]} : vector<8x128xf32> to vector<1x32xf32>
    %12 = vector.extract_strided_slice %9 {offsets = [2, 0], sizes = [1, 32], strides = [1, 1]} : vector<8x128xf32> to vector<1x32xf32>
    %13 = vector.extract_strided_slice %9 {offsets = [3, 0], sizes = [1, 32], strides = [1, 1]} : vector<8x128xf32> to vector<1x32xf32>
    %14 = vector.extract_strided_slice %9 {offsets = [4, 0], sizes = [1, 32], strides = [1, 1]} : vector<8x128xf32> to vector<1x32xf32>
    %15 = vector.extract_strided_slice %9 {offsets = [5, 0], sizes = [1, 32], strides = [1, 1]} : vector<8x128xf32> to vector<1x32xf32>
    %16 = vector.extract_strided_slice %9 {offsets = [6, 0], sizes = [1, 32], strides = [1, 1]} : vector<8x128xf32> to vector<1x32xf32>
    %17 = vector.extract_strided_slice %7 {offsets = [0, 0, 0], sizes = [1, 32, 32], strides = [1, 1, 1]} : vector<3x32x32xf32> to vector<1x32x32xf32>
    %18 = vector.shape_cast %17 : vector<1x32x32xf32> to vector<32x32xf32>
    "tpu.trace_start"() <{level = 10 : i32, message = "oe,te->ot"}> : () -> ()
    %cst = arith.constant dense<0.000000e+00> : vector<32x16xf32>
    %19 = tpu.matmul %18, %4, %cst {dimension_numbers = #tpu.dot_dimension_numbers<[1], [1], [0], [0], [0, 0, 1, 0], [], []>} : vector<32x32xf32>, vector<16x32xf32>, vector<32x16xf32> -> vector<32x16xf32>
    "tpu.trace_stop"() : () -> ()
    %20 = vector.shape_cast %19 : vector<32x16xf32> to vector<4x8x16xf32>
    %21 = vector.extract_strided_slice %7 {offsets = [1, 0, 0], sizes = [1, 32, 32], strides = [1, 1, 1]} : vector<3x32x32xf32> to vector<1x32x32xf32>
    %22 = vector.shape_cast %21 : vector<1x32x32xf32> to vector<32x32xf32>
    "tpu.trace_start"() <{level = 10 : i32, message = "oe,te->ot"}> : () -> ()
    %cst_10 = arith.constant dense<0.000000e+00> : vector<32x16xf32>
    %23 = tpu.matmul %22, %2, %cst_10 {dimension_numbers = #tpu.dot_dimension_numbers<[1], [1], [0], [0], [0, 0, 1, 0], [], []>} : vector<32x32xf32>, vector<16x32xf32>, vector<32x16xf32> -> vector<32x16xf32>
    "tpu.trace_stop"() : () -> ()
    %24 = vector.shape_cast %23 : vector<32x16xf32> to vector<4x8x16xf32>
    %c0_11 = arith.constant 0 : index
    %c0_12 = arith.constant 0 : index
    %c0_13 = arith.constant 0 : index
    %25 = vector.load %arg1[%c0_11, %c0_12, %c0_13] : memref<4x16x8xf32, #tpu.memory_space<vmem>>, vector<4x16x8xf32>
    %cst_14 = arith.constant 0.176776692 : f32
    %26 = vector.broadcast %cst_14 : f32 to vector<4x16x8xf32>
    %27 = arith.mulf %25, %26 : vector<4x16x8xf32>
    "tpu.trace_start"() <{level = 10 : i32, message = "hqd,hdk->hqk"}> : () -> ()
    %cst_15 = arith.constant dense<0.000000e+00> : vector<4x16x16xf32>
    %28 = tpu.matmul %27, %20, %cst_15 {dimension_numbers = #tpu.dot_dimension_numbers<[2], [1], [1], [2], [0, 0, 0, 1, 1, 2], [0], [0]>} : vector<4x16x8xf32>, vector<4x8x16xf32>, vector<4x16x16xf32> -> vector<4x16x16xf32>
    "tpu.trace_stop"() : () -> ()
    %c0_16 = arith.constant 0 : index
    %c0_17 = arith.constant 0 : index
    %29 = vector.load %arg2[%c0_16, %c0_17] : memref<16x16xf32, #tpu.memory_space<vmem>>, vector<16x16xf32>
    %30 = vector.shape_cast %29 : vector<16x16xf32> to vector<1x16x16xf32>
    %31 = vector.broadcast %30 : vector<1x16x16xf32> to vector<4x16x16xf32>
    %32 = arith.addf %28, %31 : vector<4x16x16xf32>
    %cst_18 = arith.constant dense<0xFF800000> : vector<4x16xf32>
    %33 = vector.multi_reduction <maximumf>, %32, %cst_18 [2] : vector<4x16x16xf32> to vector<4x16xf32>
    %34 = vector.shape_cast %33 : vector<4x16xf32> to vector<4x16x1xf32>
    %35 = vector.broadcast %34 : vector<4x16x1xf32> to vector<4x16x16xf32>
    %36 = arith.subf %32, %35 : vector<4x16x16xf32>
    %37 = math.exp %36 : vector<4x16x16xf32>
    %cst_19 = arith.constant dense<0.000000e+00> : vector<4x16xf32>
    %38 = vector.multi_reduction <add>, %37, %cst_19 [2] : vector<4x16x16xf32> to vector<4x16xf32>
    %39 = vector.shape_cast %38 : vector<4x16xf32> to vector<4x16x1xf32>
    %40 = vector.broadcast %39 : vector<4x16x1xf32> to vector<4x16x16xf32>
    %41 = arith.divf %37, %40 : vector<4x16x16xf32>
    "tpu.trace_start"() <{level = 10 : i32, message = "hqk,hdk->hqd"}> : () -> ()
    %cst_20 = arith.constant dense<0.000000e+00> : vector<4x16x8xf32>
    %42 = tpu.matmul %41, %24, %cst_20 {dimension_numbers = #tpu.dot_dimension_numbers<[2], [2], [1], [1], [0, 0, 0, 1, 1, 1], [0], [0]>} : vector<4x16x16xf32>, vector<4x8x16xf32>, vector<4x16x8xf32> -> vector<4x16x8xf32>
    "tpu.trace_stop"() : () -> ()
    %43 = vector.extract_strided_slice %7 {offsets = [2, 0, 0], sizes = [1, 32, 32], strides = [1, 1, 1]} : vector<3x32x32xf32> to vector<1x32x32xf32>
    %44 = vector.shape_cast %43 : vector<1x32x32xf32> to vector<32x32xf32>
    %45 = vector.shape_cast %44 : vector<32x32xf32> to vector<4x8x32xf32>
    "tpu.trace_start"() <{level = 10 : i32, message = "htd,hde->hte"}> : () -> ()
    %cst_21 = arith.constant dense<0.000000e+00> : vector<4x16x32xf32>
    %46 = tpu.matmul %42, %45, %cst_21 {dimension_numbers = #tpu.dot_dimension_numbers<[2], [1], [1], [2], [0, 0, 0, 1, 1, 2], [0], [0]>} : vector<4x16x8xf32>, vector<4x8x32xf32>, vector<4x16x32xf32> -> vector<4x16x32xf32>
    "tpu.trace_stop"() : () -> ()
    %cst_22 = arith.constant dense<0.000000e+00> : vector<16x32xf32>
    %47 = vector.multi_reduction <add>, %46, %cst_22 [0] : vector<4x16x32xf32> to vector<16x32xf32>
    %48 = vector.broadcast %11 : vector<1x32xf32> to vector<16x32xf32>
    %49 = arith.addf %47, %48 : vector<16x32xf32>
    %50 = arith.addf %49, %6 : vector<16x32xf32>
    %cst_23 = arith.constant dense<0.000000e+00> : vector<16xf32>
    %51 = vector.multi_reduction <add>, %50, %cst_23 [1] : vector<16x32xf32> to vector<16xf32>
    %52 = vector.shape_cast %51 : vector<16xf32> to vector<16x1xf32>
    %cst_24 = arith.constant 3.200000e+01 : f32
    %53 = vector.broadcast %cst_24 : f32 to vector<16x1xf32>
    %54 = arith.divf %52, %53 : vector<16x1xf32>
    %55 = vector.broadcast %54 : vector<16x1xf32> to vector<16x32xf32>
    %56 = arith.subf %50, %55 : vector<16x32xf32>
    %57 = arith.mulf %56, %56 : vector<16x32xf32>
    %cst_25 = arith.constant dense<0.000000e+00> : vector<16xf32>
    %58 = vector.multi_reduction <add>, %57, %cst_25 [1] : vector<16x32xf32> to vector<16xf32>
    %59 = vector.shape_cast %58 : vector<16xf32> to vector<16x1xf32>
    %cst_26 = arith.constant 3.200000e+01 : f32
    %60 = vector.broadcast %cst_26 : f32 to vector<16x1xf32>
    %61 = arith.divf %59, %60 : vector<16x1xf32>
    %62 = vector.broadcast %54 : vector<16x1xf32> to vector<16x32xf32>
    %63 = arith.subf %50, %62 : vector<16x32xf32>
    %cst_27 = arith.constant 9.99999974E-6 : f32
    %64 = vector.broadcast %cst_27 : f32 to vector<16x1xf32>
    %65 = arith.addf %61, %64 : vector<16x1xf32>
    %66 = math.rsqrt %65 : vector<16x1xf32>
    %67 = vector.broadcast %66 : vector<16x1xf32> to vector<16x32xf32>
    %68 = arith.mulf %63, %67 : vector<16x32xf32>
    %69 = vector.broadcast %12 : vector<1x32xf32> to vector<16x32xf32>
    %70 = arith.mulf %68, %69 : vector<16x32xf32>
    %71 = vector.broadcast %13 : vector<1x32xf32> to vector<16x32xf32>
    %72 = arith.addf %70, %71 : vector<16x32xf32>
    %73 = vector.extract_strided_slice %8 {offsets = [0, 0, 0], sizes = [1, 32, 128], strides = [1, 1, 1]} : vector<2x32x128xf32> to vector<1x32x128xf32>
    %74 = vector.shape_cast %73 : vector<1x32x128xf32> to vector<32x128xf32>
    %cst_28 = arith.constant dense<0.000000e+00> : vector<16x128xf32>
    %75 = tpu.matmul %72, %74, %cst_28 {dimension_numbers = #tpu.dot_dimension_numbers<[1], [0], [0], [1], [0, 0, 1, 1], [], []>} : vector<16x32xf32>, vector<32x128xf32>, vector<16x128xf32> -> vector<16x128xf32>
    %76 = vector.broadcast %10 : vector<1x128xf32> to vector<16x128xf32>
    %77 = arith.addf %75, %76 : vector<16x128xf32>
    %cst_29 = arith.constant 0.000000e+00 : f32
    %78 = vector.broadcast %cst_29 : f32 to vector<16x128xf32>
    %79 = arith.maximumf %77, %78 : vector<16x128xf32>
    %80 = vector.extract_strided_slice %8 {offsets = [1, 0, 0], sizes = [1, 32, 128], strides = [1, 1, 1]} : vector<2x32x128xf32> to vector<1x32x128xf32>
    %81 = vector.shape_cast %80 : vector<1x32x128xf32> to vector<32x128xf32>
    "tpu.trace_start"() <{level = 10 : i32, message = "th,eh->te"}> : () -> ()
    %cst_30 = arith.constant dense<0.000000e+00> : vector<16x32xf32>
    %82 = tpu.matmul %79, %81, %cst_30 {dimension_numbers = #tpu.dot_dimension_numbers<[1], [1], [0], [0], [0, 0, 1, 0], [], []>} : vector<16x128xf32>, vector<32x128xf32>, vector<16x32xf32> -> vector<16x32xf32>
    "tpu.trace_stop"() : () -> ()
    %83 = vector.broadcast %14 : vector<1x32xf32> to vector<16x32xf32>
    %84 = arith.addf %82, %83 : vector<16x32xf32>
    %85 = arith.addf %84, %72 : vector<16x32xf32>
    %cst_31 = arith.constant dense<0.000000e+00> : vector<16xf32>
    %86 = vector.multi_reduction <add>, %85, %cst_31 [1] : vector<16x32xf32> to vector<16xf32>
    %87 = vector.shape_cast %86 : vector<16xf32> to vector<16x1xf32>
    %cst_32 = arith.constant 3.200000e+01 : f32
    %88 = vector.broadcast %cst_32 : f32 to vector<16x1xf32>
    %89 = arith.divf %87, %88 : vector<16x1xf32>
    %90 = vector.broadcast %89 : vector<16x1xf32> to vector<16x32xf32>
    %91 = arith.subf %85, %90 : vector<16x32xf32>
    %92 = arith.mulf %91, %91 : vector<16x32xf32>
    %cst_33 = arith.constant dense<0.000000e+00> : vector<16xf32>
    %93 = vector.multi_reduction <add>, %92, %cst_33 [1] : vector<16x32xf32> to vector<16xf32>
    %94 = vector.shape_cast %93 : vector<16xf32> to vector<16x1xf32>
    %cst_34 = arith.constant 3.200000e+01 : f32
    %95 = vector.broadcast %cst_34 : f32 to vector<16x1xf32>
    %96 = arith.divf %94, %95 : vector<16x1xf32>
    %97 = vector.broadcast %89 : vector<16x1xf32> to vector<16x32xf32>
    %98 = arith.subf %85, %97 : vector<16x32xf32>
    %cst_35 = arith.constant 9.99999974E-6 : f32
    %99 = vector.broadcast %cst_35 : f32 to vector<16x1xf32>
    %100 = arith.addf %96, %99 : vector<16x1xf32>
    %101 = math.rsqrt %100 : vector<16x1xf32>
    %102 = vector.broadcast %101 : vector<16x1xf32> to vector<16x32xf32>
    %103 = arith.mulf %98, %102 : vector<16x32xf32>
    %104 = vector.broadcast %15 : vector<1x32xf32> to vector<16x32xf32>
    %105 = arith.mulf %103, %104 : vector<16x32xf32>
    %106 = vector.broadcast %16 : vector<1x32xf32> to vector<16x32xf32>
    %107 = arith.addf %105, %106 : vector<16x32xf32>
    %c0_36 = arith.constant 0 : index
    %c0_37 = arith.constant 0 : index
    %108 = vector.load %arg6[%c0_36, %c0_37] : memref<16x32xf32, #tpu.memory_space<vmem>>, vector<16x32xf32>
    tpu.vector_store %arg6[%c0_36, %c0_37], %107 {strides = array<i32>} : memref<16x32xf32, #tpu.memory_space<vmem>>, vector<16x32xf32>,
    return
  }
}

</mosaic_0001>

<llo_original>
// kernel: transformer_block.1
$region0: #{transformer_block.1}
  #allocation0 [shape = 'u32[]', space=smem, size = 0x4, offset = 0x4, fixed_abs, tag = 'smem constant byte address 0x4 - core index']
  #allocation1 [shape = 'u32[72,128]{1,0:T(1,128)}', space=vmem, size = 0x9000, scoped, tag = 'internal scratch']
  %s0 = inlined_call_operand.vmem [shape: f32[3,16,32], index: 0, kind: input, shape index: {}]
  %s1 = inlined_call_operand.vmem [shape: f32[4,16,8], index: 1, kind: input, shape index: {}]
  %s2 = inlined_call_operand.vmem [shape: f32[16,16], index: 2, kind: input, shape index: {}]
  %s3 = inlined_call_operand.vmem [shape: f32[3,32,32], index: 3, kind: input, shape index: {}]
  %s4 = inlined_call_operand.vmem [shape: f32[2,32,128], index: 4, kind: input, shape index: {}]
  %s5 = inlined_call_operand.vmem [shape: f32[8,128], index: 5, kind: input, shape index: {}]
  %s6 = inlined_call_operand.hbm [shape: f32[16,32], index: 6, kind: output, shape index: {}]
  %s7 = sld [smem:[#allocation0]]
  $region34: #{transformer_block.1} parent=0
    _
  %s9 = ssub.s32 1, %s7
  %s10 = scalar_select 0, %s9, %s7
  $region1: #{transformer_block.1} parent=0
    #allocation2 [shape = 'u8[8192]{0}', space=vmem, size = 0x2000, scoped, tag = 'output window, operand 0, single buffered']
    #allocation3 [shape = 's32[1]{0}', space=sflag, size = 0x4, scoped, tag = 'scoped memory for transformer_block.1']
    %11 = vsyncpa [#allocation3], 0
    // Predicated region
    $region2: #{transformer_block.1} parent=1 // pred_check
      _
    $region3: #{transformer_block.1} parent=1 // pred_check_branch
      %13 = sbr.rel (0) target = $region5
    $region4: #{transformer_block.1} parent=1 // pred_region
      _
    $region5: #{transformer_block.1} parent=1 // pred_fallthru
      _
    // Predicated region
    $region6: #{transformer_block.1} parent=1 // pred_check
      _
    $region7: #{transformer_block.1} parent=1 // pred_check_branch
      %15 = sbr.rel (0) target = $region9
    $region8: #{transformer_block.1} parent=1 // pred_region
      _
    $region9: #{transformer_block.1} parent=1 // pred_fallthru
      _
    // Predicated region
    $region10: #{transformer_block.1} parent=1 // pred_check
      _
    $region11: #{transformer_block.1} parent=1 // pred_check_branch
      %17 = sbr.rel (0) target = $region13
    $region12: #{transformer_block.1} parent=1 // pred_region
      _
    $region13: #{transformer_block.1} parent=1 // pred_fallthru
      _
    // Predicated region
    $region14: #{transformer_block.1} parent=1 // pred_check
      _
    $region15: #{transformer_block.1} parent=1 // pred_check_branch
      %19 = sbr.rel (0) target = $region17
    $region16: #{transformer_block.1} parent=1 // pred_region
      _
    $region17: #{transformer_block.1} parent=1 // pred_fallthru
      _
    // Predicated region
    $region18: #{transformer_block.1} parent=1 // pred_check
      _
    $region19: #{transformer_block.1} parent=1 // pred_check_branch
      %21 = sbr.rel (0) target = $region21
    $region20: #{transformer_block.1} parent=1 // pred_region
      _
    $region21: #{transformer_block.1} parent=1 // pred_fallthru
      _
    // Predicated region
    $region22: #{transformer_block.1} parent=1 // pred_check
      _
    $region23: #{transformer_block.1} parent=1 // pred_check_branch
      %23 = sbr.rel (0) target = $region25
    $region24: #{transformer_block.1} parent=1 // pred_region
      _
    $region25: #{transformer_block.1} parent=1 // pred_fallthru
      _
    %v24 = vld [vmem:[%s0] sm:$0xff]
    %v25 = vld [vmem:[%s0 + $0x8] sm:$0xff]
    %v26 = vld [vmem:[%s0 + $0x10] sm:$0xff]
    %v27 = vld [vmem:[%s0 + $0x18] sm:$0xff]
    %v28 = vld [vmem:[%s0 + $0x20] sm:$0xff]
    %v29 = vld [vmem:[%s0 + $0x28] sm:$0xff]
    %v30 = vld [vmem:[%s3] sm:$0xff]
    %v31 = vld [vmem:[%s3 + $0x8] sm:$0xff]
    %v32 = vld [vmem:[%s3 + $0x10] sm:$0xff]
    %v33 = vld [vmem:[%s3 + $0x18] sm:$0xff]
    %v34 = vld [vmem:[%s3 + $0x20] sm:$0xff]
    %v35 = vld [vmem:[%s3 + $0x28] sm:$0xff]
    %v36 = vld [vmem:[%s3 + $0x30] sm:$0xff]
    %v37 = vld [vmem:[%s3 + $0x38] sm:$0xff]
    %v38 = vld [vmem:[%s3 + $0x40] sm:$0xff]
    %v39 = vld [vmem:[%s3 + $0x48] sm:$0xff]
    %v40 = vld [vmem:[%s3 + $0x50] sm:$0xff]
    %v41 = vld [vmem:[%s3 + $0x58] sm:$0xff]
    %v42 = vld [vmem:[%s4] sm:$0xff]
    %v43 = vld [vmem:[%s4 + $0x8] sm:$0xff]
    %v44 = vld [vmem:[%s4 + $0x10] sm:$0xff]
    %v45 = vld [vmem:[%s4 + $0x18] sm:$0xff]
    %v46 = vld [vmem:[%s4 + $0x20] sm:$0xff]
    %v47 = vld [vmem:[%s4 + $0x28] sm:$0xff]
    %v48 = vld [vmem:[%s4 + $0x30] sm:$0xff]
    %v49 = vld [vmem:[%s4 + $0x38] sm:$0xff]
    %v50 = vld [vmem:[%s5] sm:$0xff]
    %vm51 = vcmask 261120
    %v53 = vsel %vm51, %v30, 0
    %v56 = vsel %vm51, %v31, 0
    %v59 = vsel %vm51, %v32, 0
    %v62 = vsel %vm51, %v33, 0
    %v65 = vsel %vm51, %v26, 0
    %v68 = vsel %vm51, %v27, 0
    %70 = vmatpush.xpose.msra.mxu0 0.0
    %71 = vmatpush.xpose.msra.mxu0 0.0
    %72 = vmatpush.xpose.msra.mxu0 0.0
    %73 = vmatpush.xpose.msra.mxu0 0.0
    %74 = vmatpush.xpose.msra.mxu0 0.0
    %75 = vmatpush.xpose.msra.mxu0 0.0
    %76 = vmatpush.xpose.msra.mxu0 0.0
    %77 = vmatpush.xpose.msra.mxu0 0.0
    %78 = vmatpush.xpose.msra.mxu0 0.0
    %79 = vmatpush.xpose.msra.mxu0 0.0
    %80 = vmatpush.xpose.msra.mxu0 0.0
    %81 = vmatpush.xpose.msra.mxu0 0.0
    %82 = vmatpush.xpose.msra.mxu0 0.0
    %83 = vmatpush.xpose.msra.mxu0 0.0
    %84 = vmatpush.xpose.msra.mxu0 %v68
    %85 = vmatpush.xpose.msra.mxu0 %v65
    %86 = vmatmul.f32.gmra.mxu0 %v53
    %v87 = vpop.f32.mrf.mxu0
    %v88 = vadd.f32 0.0, %v87
    %89 = vmatmul.f32.gmra.mxu0 %v56
    %v90 = vpop.f32.mrf.mxu0
    %v91 = vadd.f32 0.0, %v90
    %92 = vmatmul.f32.gmra.mxu0 %v59
    %v93 = vpop.f32.mrf.mxu0
    %v94 = vadd.f32 0.0, %v93
    %95 = vmatmul.f32.gmra.mxu0 %v62
    %v96 = vpop.f32.mrf.mxu0
    %v97 = vadd.f32 0.0, %v96
    %98 = vdwg.mxu0
    %v100 = vsel %vm51, %v34, 0
    %v103 = vsel %vm51, %v35, 0
    %v106 = vsel %vm51, %v36, 0
    %v109 = vsel %vm51, %v37, 0
    %v112 = vsel %vm51, %v24, 0
    %v115 = vsel %vm51, %v25, 0
    %117 = vmatpush.xpose.msra.mxu0 0.0
    %118 = vmatpush.xpose.msra.mxu0 0.0
    %119 = vmatpush.xpose.msra.mxu0 0.0
    %120 = vmatpush.xpose.msra.mxu0 0.0
    %121 = vmatpush.xpose.msra.mxu0 0.0
    %122 = vmatpush.xpose.msra.mxu0 0.0
    %123 = vmatpush.xpose.msra.mxu0 0.0
    %124 = vmatpush.xpose.msra.mxu0 0.0
    %125 = vmatpush.xpose.msra.mxu0 0.0
    %126 = vmatpush.xpose.msra.mxu0 0.0
    %127 = vmatpush.xpose.msra.mxu0 0.0
    %128 = vmatpush.xpose.msra.mxu0 0.0
    %129 = vmatpush.xpose.msra.mxu0 0.0
    %130 = vmatpush.xpose.msra.mxu0 0.0
    %131 = vmatpush.xpose.msra.mxu0 %v115
    %132 = vmatpush.xpose.msra.mxu0 %v112
    %133 = vmatmul.f32.gmra.mxu0 %v100
    %v134 = vpop.f32.mrf.mxu0
    %v135 = vadd.f32 0.0, %v134
    %136 = vmatmul.f32.gmra.mxu0 %v103
    %v137 = vpop.f32.mrf.mxu0
    %v138 = vadd.f32 0.0, %v137
    %139 = vmatmul.f32.gmra.mxu0 %v106
    %v140 = vpop.f32.mrf.mxu0
    %v141 = vadd.f32 0.0, %v140
    %142 = vmatmul.f32.gmra.mxu0 %v109
    %v143 = vpop.f32.mrf.mxu0
    %v144 = vadd.f32 0.0, %v143
    %145 = vdwg.mxu0
    %v146 = vld [vmem:[%s1] sm:$0xff]
    %v147 = vld [vmem:[%s1 + $0x8] sm:$0xff]
    %v148 = vld [vmem:[%s1 + $0x10] sm:$0xff]
    %v149 = vld [vmem:[%s1 + $0x18] sm:$0xff]
    %v150 = vld [vmem:[%s1 + $0x20] sm:$0xff]
    %v151 = vld [vmem:[%s1 + $0x28] sm:$0xff]
    %v152 = vld [vmem:[%s1 + $0x30] sm:$0xff]
    %v153 = vld [vmem:[%s1 + $0x38] sm:$0xff]
    %v154 = vmul.f32 %v146, 0.17677669
    %v155 = vmul.f32 %v147, 0.17677669
    %v156 = vmul.f32 %v148, 0.17677669
    %v157 = vmul.f32 %v149, 0.17677669
    %v158 = vmul.f32 %v150, 0.17677669
    %v159 = vmul.f32 %v151, 0.17677669
    %v160 = vmul.f32 %v152, 0.17677669
    %v161 = vmul.f32 %v153, 0.17677669
    %v162 = vld [vmem:[%s2] sm:$0xff]
    %v163 = vld [vmem:[%s2 + $0x8] sm:$0xff]
    %vm164 = vcmask 64512
    %v166 = vsel %vm164, %v154, 0
    %v169 = vsel %vm164, %v155, 0
    %171 = vmatpush.msra.mxu0 0.0
    %172 = vmatpush.msra.mxu0 0.0
    %173 = vmatpush.msra.mxu0 0.0
    %174 = vmatpush.msra.mxu0 0.0
    %175 = vmatpush.msra.mxu0 0.0
    %176 = vmatpush.msra.mxu0 0.0
    %177 = vmatpush.msra.mxu0 0.0
    %178 = vmatpush.msra.mxu0 0.0
    %179 = vmatpush.msra.mxu0 0.0
    %180 = vmatpush.msra.mxu0 0.0
    %181 = vmatpush.msra.mxu0 0.0
    %182 = vmatpush.msra.mxu0 0.0
    %183 = vmatpush.msra.mxu0 0.0
    %184 = vmatpush.msra.mxu0 0.0
    %185 = vmatpush.msra.mxu0 0.0
    %186 = vmatpush.msra.mxu0 %v88
    %187 = vmatmul.f32.gmra.mxu0 %v166
    %v188 = vpop.f32.mrf.mxu0
    %v189 = vadd.f32 %v162, %v188
    %190 = vmatmul.f32.gmra.mxu0 %v169
    %v191 = vpop.f32.mrf.mxu0
    %v192 = vadd.f32 %v163, %v191
    %193 = vdwg.mxu0
    %v195 = vsel %vm164, %v156, 0
    %v198 = vsel %vm164, %v157, 0
    %200 = vmatpush.msra.mxu0 0.0
    %201 = vmatpush.msra.mxu0 0.0
    %202 = vmatpush.msra.mxu0 0.0
    %203 = vmatpush.msra.mxu0 0.0
    %204 = vmatpush.msra.mxu0 0.0
    %205 = vmatpush.msra.mxu0 0.0
    %206 = vmatpush.msra.mxu0 0.0
    %207 = vmatpush.msra.mxu0 0.0
    %208 = vmatpush.msra.mxu0 0.0
    %209 = vmatpush.msra.mxu0 0.0
    %210 = vmatpush.msra.mxu0 0.0
    %211 = vmatpush.msra.mxu0 0.0
    %212 = vmatpush.msra.mxu0 0.0
    %213 = vmatpush.msra.mxu0 0.0
    %214 = vmatpush.msra.mxu0 0.0
    %215 = vmatpush.msra.mxu0 %v91
    %216 = vmatmul.f32.gmra.mxu0 %v195
    %v217 = vpop.f32.mrf.mxu0
    %v218 = vadd.f32 %v162, %v217
    %219 = vmatmul.f32.gmra.mxu0 %v198
    %v220 = vpop.f32.mrf.mxu0
    %v221 = vadd.f32 %v163, %v220
    %222 = vdwg.mxu0
    %v224 = vsel %vm164, %v158, 0
    %v227 = vsel %vm164, %v159, 0
    %229 = vmatpush.msra.mxu0 0.0
    %230 = vmatpush.msra.mxu0 0.0
    %231 = vmatpush.msra.mxu0 0.0
    %232 = vmatpush.msra.mxu0 0.0
    %233 = vmatpush.msra.mxu0 0.0
    %234 = vmatpush.msra.mxu0 0.0
    %235 = vmatpush.msra.mxu0 0.0
    %236 = vmatpush.msra.mxu0 0.0
    %237 = vmatpush.msra.mxu0 0.0
    %238 = vmatpush.msra.mxu0 0.0
    %239 = vmatpush.msra.mxu0 0.0
    %240 = vmatpush.msra.mxu0 0.0
    %241 = vmatpush.msra.mxu0 0.0
    %242 = vmatpush.msra.mxu0 0.0
    %243 = vmatpush.msra.mxu0 0.0
    %244 = vmatpush.msra.mxu0 %v94
    %245 = vmatmul.f32.gmra.mxu0 %v224
    %v246 = vpop.f32.mrf.mxu0
    %v247 = vadd.f32 %v162, %v246
    %248 = vmatmul.f32.gmra.mxu0 %v227
    %v249 = vpop.f32.mrf.mxu0
    %v250 = vadd.f32 %v163, %v249
    %251 = vdwg.mxu0
    %v253 = vsel %vm164, %v160, 0
    %v256 = vsel %vm164, %v161, 0
    %258 = vmatpush.msra.mxu0 0.0
    %259 = vmatpush.msra.mxu0 0.0
    %260 = vmatpush.msra.mxu0 0.0
    %261 = vmatpush.msra.mxu0 0.0
    %262 = vmatpush.msra.mxu0 0.0
    %263 = vmatpush.msra.mxu0 0.0
    %264 = vmatpush.msra.mxu0 0.0
    %265 = vmatpush.msra.mxu0 0.0
    %266 = vmatpush.msra.mxu0 0.0
    %267 = vmatpush.msra.mxu0 0.0
    %268 = vmatpush.msra.mxu0 0.0
    %269 = vmatpush.msra.mxu0 0.0
    %270 = vmatpush.msra.mxu0 0.0
    %271 = vmatpush.msra.mxu0 0.0
    %272 = vmatpush.msra.mxu0 0.0
    %273 = vmatpush.msra.mxu0 %v97
    %274 = vmatmul.f32.gmra.mxu0 %v253
    %v275 = vpop.f32.mrf.mxu0
    %v276 = vadd.f32 %v162, %v275
    %277 = vmatmul.f32.gmra.mxu0 %v256
    %v278 = vpop.f32.mrf.mxu0
    %v279 = vadd.f32 %v163, %v278
    %280 = vdwg.mxu0
    %vm281 = vcmask 130048
    %v282 = vsel %vm281, %v189, -inf
    %283 = vmax.xlane.f32.xlu0 %v282
    %v284 = vpop.xlane.xlu0 %283
    %v285 = vsel %vm281, %v192, -inf
    %286 = vmax.xlane.f32.xlu0 %v285
    %v287 = vpop.xlane.xlu0 %286
    %v288 = vsel %vm281, %v218, -inf
    %289 = vmax.xlane.f32.xlu0 %v288
    %v290 = vpop.xlane.xlu0 %289
    %v291 = vsel %vm281, %v221, -inf
    %292 = vmax.xlane.f32.xlu0 %v291
    %v293 = vpop.xlane.xlu0 %292
    %v294 = vsel %vm281, %v247, -inf
    %295 = vmax.xlane.f32.xlu0 %v294
    %v296 = vpop.xlane.xlu0 %295
    %v297 = vsel %vm281, %v250, -inf
    %298 = vmax.xlane.f32.xlu0 %v297
    %v299 = vpop.xlane.xlu0 %298
    %v300 = vsel %vm281, %v276, -inf
    %301 = vmax.xlane.f32.xlu0 %v300
    %v302 = vpop.xlane.xlu0 %301
    %v303 = vsel %vm281, %v279, -inf
    %304 = vmax.xlane.f32.xlu0 %v303
    %v305 = vpop.xlane.xlu0 %304
    %v306 = vsub.f32 %v189, %v284
    %v307 = vsub.f32 %v192, %v287
    %v308 = vsub.f32 %v218, %v290
    %v309 = vsub.f32 %v221, %v293
    %v310 = vsub.f32 %v247, %v296
    %v311 = vsub.f32 %v250, %v299
    %v312 = vsub.f32 %v276, %v302
    %v313 = vsub.f32 %v279, %v305
    %v314 = vmul.f32 %v306, 1.442695
    %v315 = vpow.pop %v314
    %v316 = vmul.f32 %v307, 1.442695
    %v317 = vpow.pop %v316
    %v318 = vmul.f32 %v308, 1.442695
    %v319 = vpow.pop %v318
    %v320 = vmul.f32 %v309, 1.442695
    %v321 = vpow.pop %v320
    %v322 = vmul.f32 %v310, 1.442695
    %v323 = vpow.pop %v322
    %v324 = vmul.f32 %v311, 1.442695
    %v325 = vpow.pop %v324
    %v326 = vmul.f32 %v312, 1.442695
    %v327 = vpow.pop %v326
    %v328 = vmul.f32 %v313, 1.442695
    %v329 = vpow.pop %v328
    %v330 = vsel %vm281, %v315, 0.0
    %331 = vadd.xlane.f32.xlu0 %v330
    %v332 = vpop.xlane.xlu0 %331
    %v333 = vsel %vm281, %v317, 0.0
    %334 = vadd.xlane.f32.xlu0 %v333
    %v335 = vpop.xlane.xlu0 %334
    %v336 = vsel %vm281, %v319, 0.0
    %337 = vadd.xlane.f32.xlu0 %v336
    %v338 = vpop.xlane.xlu0 %337
    %v339 = vsel %vm281, %v321, 0.0
    %340 = vadd.xlane.f32.xlu0 %v339
    %v341 = vpop.xlane.xlu0 %340
    %v342 = vsel %vm281, %v323, 0.0
    %343 = vadd.xlane.f32.xlu0 %v342
    %v344 = vpop.xlane.xlu0 %343
    %v345 = vsel %vm281, %v325, 0.0
    %346 = vadd.xlane.f32.xlu0 %v345
    %v347 = vpop.xlane.xlu0 %346
    %v348 = vsel %vm281, %v327, 0.0
    %349 = vadd.xlane.f32.xlu0 %v348
    %v350 = vpop.xlane.xlu0 %349
    %v351 = vsel %vm281, %v329, 0.0
    %352 = vadd.xlane.f32.xlu0 %v351
    %v353 = vpop.xlane.xlu0 %352
    %v354 = vrcp.pop %v332
    %v355 = vmul.f32 %v332, %v354
    %v356 = vsub.f32 1.0, %v355
    %v357 = vmul.f32 %v354, %v356
    %v358 = vadd.f32 %v354, %v357
    %vm359 = vweird.f32 %v332
    %vm360 = vweird.f32 %v354
    %vm361 = vmor %vm359, %vm360
    %v362 = vsel %vm361, %v354, %v358
    %v363 = vand.u32 2147483647, %v332
    %vm364 = vcmp.eq.f32.partialorder %v363, 8.507059e+37
    %v365 = vand.u32 %v332, 2147483648
    %v366 = vor.u32 1.1754944e-38, %v365
    %v367 = vsel %vm364, %v366, %v362
    %v368 = vmul.f32 %v315, %v367
    %v369 = vrcp.pop %v335
    %v370 = vmul.f32 %v335, %v369
    %v371 = vsub.f32 1.0, %v370
    %v372 = vmul.f32 %v369, %v371
    %v373 = vadd.f32 %v369, %v372
    %vm374 = vweird.f32 %v335
    %vm375 = vweird.f32 %v369
    %vm376 = vmor %vm374, %vm375
    %v377 = vsel %vm376, %v369, %v373
    %v378 = vand.u32 2147483647, %v335
    %vm379 = vcmp.eq.f32.partialorder %v378, 8.507059e+37
    %v380 = vand.u32 %v335, 2147483648
    %v381 = vor.u32 1.1754944e-38, %v380
    %v382 = vsel %vm379, %v381, %v377
    %v383 = vmul.f32 %v317, %v382
    %v384 = vrcp.pop %v338
    %v385 = vmul.f32 %v338, %v384
    %v386 = vsub.f32 1.0, %v385
    %v387 = vmul.f32 %v384, %v386
    %v388 = vadd.f32 %v384, %v387
    %vm389 = vweird.f32 %v338
    %vm390 = vweird.f32 %v384
    %vm391 = vmor %vm389, %vm390
    %v392 = vsel %vm391, %v384, %v388
    %v393 = vand.u32 2147483647, %v338
    %vm394 = vcmp.eq.f32.partialorder %v393, 8.507059e+37
    %v395 = vand.u32 %v338, 2147483648
    %v396 = vor.u32 1.1754944e-38, %v395
    %v397 = vsel %vm394, %v396, %v392
    %v398 = vmul.f32 %v319, %v397
    %v399 = vrcp.pop %v341
    %v400 = vmul.f32 %v341, %v399
    %v401 = vsub.f32 1.0, %v400
    %v402 = vmul.f32 %v399, %v401
    %v403 = vadd.f32 %v399, %v402
    %vm404 = vweird.f32 %v341
    %vm405 = vweird.f32 %v399
    %vm406 = vmor %vm404, %vm405
    %v407 = vsel %vm406, %v399, %v403
    %v408 = vand.u32 2147483647, %v341
    %vm409 = vcmp.eq.f32.partialorder %v408, 8.507059e+37
    %v410 = vand.u32 %v341, 2147483648
    %v411 = vor.u32 1.1754944e-38, %v410
    %v412 = vsel %vm409, %v411, %v407
    %v413 = vmul.f32 %v321, %v412
    %v414 = vrcp.pop %v344
    %v415 = vmul.f32 %v344, %v414
    %v416 = vsub.f32 1.0, %v415
    %v417 = vmul.f32 %v414, %v416
    %v418 = vadd.f32 %v414, %v417
    %vm419 = vweird.f32 %v344
    %vm420 = vweird.f32 %v414
    %vm421 = vmor %vm419, %vm420
    %v422 = vsel %vm421, %v414, %v418
    %v423 = vand.u32 2147483647, %v344
    %vm424 = vcmp.eq.f32.partialorder %v423, 8.507059e+37
    %v425 = vand.u32 %v344, 2147483648
    %v426 = vor.u32 1.1754944e-38, %v425
    %v427 = vsel %vm424, %v426, %v422
    %v428 = vmul.f32 %v323, %v427
    %v429 = vrcp.pop %v347
    %v430 = vmul.f32 %v347, %v429
    %v431 = vsub.f32 1.0, %v430
    %v432 = vmul.f32 %v429, %v431
    %v433 = vadd.f32 %v429, %v432
    %vm434 = vweird.f32 %v347
    %vm435 = vweird.f32 %v429
    %vm436 = vmor %vm434, %vm435
    %v437 = vsel %vm436, %v429, %v433
    %v438 = vand.u32 2147483647, %v347
    %vm439 = vcmp.eq.f32.partialorder %v438, 8.507059e+37
    %v440 = vand.u32 %v347, 2147483648
    %v441 = vor.u32 1.1754944e-38, %v440
    %v442 = vsel %vm439, %v441, %v437
    %v443 = vmul.f32 %v325, %v442
    %v444 = vrcp.pop %v350
    %v445 = vmul.f32 %v350, %v444
    %v446 = vsub.f32 1.0, %v445
    %v447 = vmul.f32 %v444, %v446
    %v448 = vadd.f32 %v444, %v447
    %vm449 = vweird.f32 %v350
    %vm450 = vweird.f32 %v444
    %vm451 = vmor %vm449, %vm450
    %v452 = vsel %vm451, %v444, %v448
    %v453 = vand.u32 2147483647, %v350
    %vm454 = vcmp.eq.f32.partialorder %v453, 8.507059e+37
    %v455 = vand.u32 %v350, 2147483648
    %v456 = vor.u32 1.1754944e-38, %v455
    %v457 = vsel %vm454, %v456, %v452
    %v458 = vmul.f32 %v327, %v457
    %v459 = vrcp.pop %v353
    %v460 = vmul.f32 %v353, %v459
    %v461 = vsub.f32 1.0, %v460
    %v462 = vmul.f32 %v459, %v461
    %v463 = vadd.f32 %v459, %v462
    %vm464 = vweird.f32 %v353
    %vm465 = vweird.f32 %v459
    %vm466 = vmor %vm464, %vm465
    %v467 = vsel %vm466, %v459, %v463
    %v468 = vand.u32 2147483647, %v353
    %vm469 = vcmp.eq.f32.partialorder %v468, 8.507059e+37
    %v470 = vand.u32 %v353, 2147483648
    %v471 = vor.u32 1.1754944e-38, %v470
    %v472 = vsel %vm469, %v471, %v467
    %v473 = vmul.f32 %v329, %v472
    %v475 = vsel %vm281, %v368, 0
    %v478 = vsel %vm281, %v383, 0
    %v481 = vsel %vm281, %v135, 0
    %483 = vmatpush.xpose.msra.mxu0 0.0
    %484 = vmatpush.xpose.msra.mxu0 0.0
    %485 = vmatpush.xpose.msra.mxu0 0.0
    %486 = vmatpush.xpose.msra.mxu0 0.0
    %487 = vmatpush.xpose.msra.mxu0 0.0
    %488 = vmatpush.xpose.msra.mxu0 0.0
    %489 = vmatpush.xpose.msra.mxu0 0.0
    %490 = vmatpush.xpose.msra.mxu0 0.0
    %491 = vmatpush.xpose.msra.mxu0 0.0
    %492 = vmatpush.xpose.msra.mxu0 0.0
    %493 = vmatpush.xpose.msra.mxu0 0.0
    %494 = vmatpush.xpose.msra.mxu0 0.0
    %495 = vmatpush.xpose.msra.mxu0 0.0
    %496 = vmatpush.xpose.msra.mxu0 0.0
    %497 = vmatpush.xpose.msra.mxu0 0.0
    %498 = vmatpush.xpose.msra.mxu0 %v481
    %499 = vmatmul.f32.gmra.mxu0 %v475
    %v500 = vpop.f32.mrf.mxu0
    %v501 = vadd.f32 0.0, %v500
    %502 = vmatmul.f32.gmra.mxu0 %v478
    %v503 = vpop.f32.mrf.mxu0
    %v504 = vadd.f32 0.0, %v503
    %505 = vdwg.mxu0
    %v507 = vsel %vm281, %v398, 0
    %v510 = vsel %vm281, %v413, 0
    %v513 = vsel %vm281, %v138, 0
    %515 = vmatpush.xpose.msra.mxu0 0.0
    %516 = vmatpush.xpose.msra.mxu0 0.0
    %517 = vmatpush.xpose.msra.mxu0 0.0
    %518 = vmatpush.xpose.msra.mxu0 0.0
    %519 = vmatpush.xpose.msra.mxu0 0.0
    %520 = vmatpush.xpose.msra.mxu0 0.0
    %521 = vmatpush.xpose.msra.mxu0 0.0
    %522 = vmatpush.xpose.msra.mxu0 0.0
    %523 = vmatpush.xpose.msra.mxu0 0.0
    %524 = vmatpush.xpose.msra.mxu0 0.0
    %525 = vmatpush.xpose.msra.mxu0 0.0
    %526 = vmatpush.xpose.msra.mxu0 0.0
    %527 = vmatpush.xpose.msra.mxu0 0.0
    %528 = vmatpush.xpose.msra.mxu0 0.0
    %529 = vmatpush.xpose.msra.mxu0 0.0
    %530 = vmatpush.xpose.msra.mxu0 %v513
    %531 = vmatmul.f32.gmra.mxu0 %v507
    %v532 = vpop.f32.mrf.mxu0
    %v533 = vadd.f32 0.0, %v532
    %534 = vmatmul.f32.gmra.mxu0 %v510
    %v535 = vpop.f32.mrf.mxu0
    %v536 = vadd.f32 0.0, %v535
    %537 = vdwg.mxu0
    %v539 = vsel %vm281, %v428, 0
    %v542 = vsel %vm281, %v443, 0
    %v545 = vsel %vm281, %v141, 0
    %547 = vmatpush.xpose.msra.mxu0 0.0
    %548 = vmatpush.xpose.msra.mxu0 0.0
    %549 = vmatpush.xpose.msra.mxu0 0.0
    %550 = vmatpush.xpose.msra.mxu0 0.0
    %551 = vmatpush.xpose.msra.mxu0 0.0
    %552 = vmatpush.xpose.msra.mxu0 0.0
    %553 = vmatpush.xpose.msra.mxu0 0.0
    %554 = vmatpush.xpose.msra.mxu0 0.0
    %555 = vmatpush.xpose.msra.mxu0 0.0
    %556 = vmatpush.xpose.msra.mxu0 0.0
    %557 = vmatpush.xpose.msra.mxu0 0.0
    %558 = vmatpush.xpose.msra.mxu0 0.0
    %559 = vmatpush.xpose.msra.mxu0 0.0
    %560 = vmatpush.xpose.msra.mxu0 0.0
    %561 = vmatpush.xpose.msra.mxu0 0.0
    %562 = vmatpush.xpose.msra.mxu0 %v545
    %563 = vmatmul.f32.gmra.mxu0 %v539
    %v564 = vpop.f32.mrf.mxu0
    %v565 = vadd.f32 0.0, %v564
    %566 = vmatmul.f32.gmra.mxu0 %v542
    %v567 = vpop.f32.mrf.mxu0
    %v568 = vadd.f32 0.0, %v567
    %569 = vdwg.mxu0
    %v571 = vsel %vm281, %v458, 0
    %v574 = vsel %vm281, %v473, 0
    %v577 = vsel %vm281, %v144, 0
    %579 = vmatpush.xpose.msra.mxu0 0.0
    %580 = vmatpush.xpose.msra.mxu0 0.0
    %581 = vmatpush.xpose.msra.mxu0 0.0
    %582 = vmatpush.xpose.msra.mxu0 0.0
    %583 = vmatpush.xpose.msra.mxu0 0.0
    %584 = vmatpush.xpose.msra.mxu0 0.0
    %585 = vmatpush.xpose.msra.mxu0 0.0
    %586 = vmatpush.xpose.msra.mxu0 0.0
    %587 = vmatpush.xpose.msra.mxu0 0.0
    %588 = vmatpush.xpose.msra.mxu0 0.0
    %589 = vmatpush.xpose.msra.mxu0 0.0
    %590 = vmatpush.xpose.msra.mxu0 0.0
    %591 = vmatpush.xpose.msra.mxu0 0.0
    %592 = vmatpush.xpose.msra.mxu0 0.0
    %593 = vmatpush.xpose.msra.mxu0 0.0
    %594 = vmatpush.xpose.msra.mxu0 %v577
    %595 = vmatmul.f32.gmra.mxu0 %v571
    %v596 = vpop.f32.mrf.mxu0
    %v597 = vadd.f32 0.0, %v596
    %598 = vmatmul.f32.gmra.mxu0 %v574
    %v599 = vpop.f32.mrf.mxu0
    %v600 = vadd.f32 0.0, %v599
    %601 = vdwg.mxu0
    %v603 = vsel %vm164, %v501, 0
    %v606 = vsel %vm164, %v504, 0
    %608 = vmatpush.msra.mxu0 0.0
    %609 = vmatpush.msra.mxu0 0.0
    %610 = vmatpush.msra.mxu0 0.0
    %611 = vmatpush.msra.mxu0 0.0
    %612 = vmatpush.msra.mxu0 0.0
    %613 = vmatpush.msra.mxu0 0.0
    %614 = vmatpush.msra.mxu0 0.0
    %615 = vmatpush.msra.mxu0 0.0
    %616 = vmatpush.msra.mxu0 0.0
    %617 = vmatpush.msra.mxu0 0.0
    %618 = vmatpush.msra.mxu0 0.0
    %619 = vmatpush.msra.mxu0 0.0
    %620 = vmatpush.msra.mxu0 0.0
    %621 = vmatpush.msra.mxu0 0.0
    %622 = vmatpush.msra.mxu0 0.0
    %623 = vmatpush.msra.mxu0 %v38
    %624 = vmatmul.f32.gmra.mxu0 %v603
    %v625 = vpop.f32.mrf.mxu0
    %v626 = vadd.f32 0.0, %v625
    %627 = vmatmul.f32.gmra.mxu0 %v606
    %v628 = vpop.f32.mrf.mxu0
    %v629 = vadd.f32 0.0, %v628
    %630 = vdwg.mxu0
    %v632 = vsel %vm164, %v533, 0
    %v635 = vsel %vm164, %v536, 0
    %637 = vmatpush.msra.mxu0 0.0
    %638 = vmatpush.msra.mxu0 0.0
    %639 = vmatpush.msra.mxu0 0.0
    %640 = vmatpush.msra.mxu0 0.0
    %641 = vmatpush.msra.mxu0 0.0
    %642 = vmatpush.msra.mxu0 0.0
    %643 = vmatpush.msra.mxu0 0.0
    %644 = vmatpush.msra.mxu0 0.0
    %645 = vmatpush.msra.mxu0 0.0
    %646 = vmatpush.msra.mxu0 0.0
    %647 = vmatpush.msra.mxu0 0.0
    %648 = vmatpush.msra.mxu0 0.0
    %649 = vmatpush.msra.mxu0 0.0
    %650 = vmatpush.msra.mxu0 0.0
    %651 = vmatpush.msra.mxu0 0.0
    %652 = vmatpush.msra.mxu0 %v39
    %653 = vmatmul.f32.gmra.mxu0 %v632
    %v654 = vpop.f32.mrf.mxu0
    %v655 = vadd.f32 0.0, %v654
    %656 = vmatmul.f32.gmra.mxu0 %v635
    %v657 = vpop.f32.mrf.mxu0
    %v658 = vadd.f32 0.0, %v657
    %659 = vdwg.mxu0
    %v661 = vsel %vm164, %v565, 0
    %v664 = vsel %vm164, %v568, 0
    %666 = vmatpush.msra.mxu0 0.0
    %667 = vmatpush.msra.mxu0 0.0
    %668 = vmatpush.msra.mxu0 0.0
    %669 = vmatpush.msra.mxu0 0.0
    %670 = vmatpush.msra.mxu0 0.0
    %671 = vmatpush.msra.mxu0 0.0
    %672 = vmatpush.msra.mxu0 0.0
    %673 = vmatpush.msra.mxu0 0.0
    %674 = vmatpush.msra.mxu0 0.0
    %675 = vmatpush.msra.mxu0 0.0
    %676 = vmatpush.msra.mxu0 0.0
    %677 = vmatpush.msra.mxu0 0.0
    %678 = vmatpush.msra.mxu0 0.0
    %679 = vmatpush.msra.mxu0 0.0
    %680 = vmatpush.msra.mxu0 0.0
    %681 = vmatpush.msra.mxu0 %v40
    %682 = vmatmul.f32.gmra.mxu0 %v661
    %v683 = vpop.f32.mrf.mxu0
    %v684 = vadd.f32 0.0, %v683
    %685 = vmatmul.f32.gmra.mxu0 %v664
    %v686 = vpop.f32.mrf.mxu0
    %v687 = vadd.f32 0.0, %v686
    %688 = vdwg.mxu0
    %v690 = vsel %vm164, %v597, 0
    %v693 = vsel %vm164, %v600, 0
    %695 = vmatpush.msra.mxu0 0.0
    %696 = vmatpush.msra.mxu0 0.0
    %697 = vmatpush.msra.mxu0 0.0
    %698 = vmatpush.msra.mxu0 0.0
    %699 = vmatpush.msra.mxu0 0.0
    %700 = vmatpush.msra.mxu0 0.0
    %701 = vmatpush.msra.mxu0 0.0
    %702 = vmatpush.msra.mxu0 0.0
    %703 = vmatpush.msra.mxu0 0.0
    %704 = vmatpush.msra.mxu0 0.0
    %705 = vmatpush.msra.mxu0 0.0
    %706 = vmatpush.msra.mxu0 0.0
    %707 = vmatpush.msra.mxu0 0.0
    %708 = vmatpush.msra.mxu0 0.0
    %709 = vmatpush.msra.mxu0 0.0
    %710 = vmatpush.msra.mxu0 %v41
    %711 = vmatmul.f32.gmra.mxu0 %v690
    %v712 = vpop.f32.mrf.mxu0
    %v713 = vadd.f32 0.0, %v712
    %714 = vmatmul.f32.gmra.mxu0 %v693
    %v715 = vpop.f32.mrf.mxu0
    %v716 = vadd.f32 0.0, %v715
    %717 = vdwg.mxu0
    %v718 = vsel %vm51, %v626, 0.0
    %v719 = vsel %vm51, %v655, 0.0
    %v720 = vadd.f32 %v718, %v719
    %v721 = vsel %vm51, %v684, 0.0
    %v722 = vadd.f32 %v720, %v721
    %v723 = vsel %vm51, %v713, 0.0
    %v724 = vadd.f32 %v722, %v723
    %v725 = vsel %vm51, %v629, 0.0
    %v726 = vsel %vm51, %v658, 0.0
    %v727 = vadd.f32 %v725, %v726
    %v728 = vsel %vm51, %v687, 0.0
    %v729 = vadd.f32 %v727, %v728
    %v730 = vsel %vm51, %v716, 0.0
    %v731 = vadd.f32 %v729, %v730
    %v732 = vperm.slane %v50, 1
    %v733 = vadd.f32 %v724, %v732
    %v734 = vadd.f32 %v731, %v732
    %v735 = vadd.f32 %v733, %v28
    %v736 = vadd.f32 %v734, %v29
    %v737 = vsel %vm51, %v735, 0.0
    %738 = vadd.xlane.f32.xlu0 %v737
    %v739 = vpop.xlane.xlu0 %738
    %v740 = vsel %vm51, %v736, 0.0
    %741 = vadd.xlane.f32.xlu0 %v740
    %v742 = vpop.xlane.xlu0 %741
    %v743 = vrcp.pop 32.0
    %v744 = vmul.f32 32.0, %v743
    %v745 = vsub.f32 1.0, %v744
    %v746 = vmul.f32 %v743, %v745
    %v747 = vadd.f32 %v743, %v746
    %vm748 = vweird.f32 %v743
    %v749 = vsel %vm748, %v743, %v747
    %v750 = vmul.f32 %v739, %v749
    %v751 = vmul.f32 %v742, %v749
    %v752 = vsub.f32 %v735, %v750
    %v753 = vsub.f32 %v736, %v751
    %v754 = vmul.f32 %v752, %v752
    %v755 = vmul.f32 %v753, %v753
    %v756 = vsel %vm51, %v754, 0.0
    %757 = vadd.xlane.f32.xlu0 %v756
    %v758 = vpop.xlane.xlu0 %757
    %v759 = vsel %vm51, %v755, 0.0
    %760 = vadd.xlane.f32.xlu0 %v759
    %v761 = vpop.xlane.xlu0 %760
    %v762 = vmul.f32 %v758, %v749
    %v763 = vmul.f32 %v761, %v749
    %v764 = vadd.f32 %v762, 1e-05
    %v765 = vadd.f32 %v763, 1e-05
    %v766 = vrsqrt.pop %v764
    %v767 = vmul.f32 %v766, %v764
    %v768 = vmul.f32 %v767, %v766
    %v769 = vmul.f32 0.5, %v768
    %v770 = vsub.f32 1.5, %v769
    %v771 = vmul.f32 %v766, %v770
    %vm772 = vweird.f32 %v764
    %vm773 = vweird.f32 %v766
    %vm774 = vmor %vm772, %vm773
    %v775 = vsel %vm774, %v766, %v771
    %v776 = vrsqrt.pop %v765
    %v777 = vmul.f32 %v776, %v765
    %v778 = vmul.f32 %v777, %v776
    %v779 = vmul.f32 0.5, %v778
    %v780 = vsub.f32 1.5, %v779
    %v781 = vmul.f32 %v776, %v780
    %vm782 = vweird.f32 %v765
    %vm783 = vweird.f32 %v776
    %vm784 = vmor %vm782, %vm783
    %v785 = vsel %vm784, %v776, %v781
    %v786 = vmul.f32 %v752, %v775
    %v787 = vmul.f32 %v753, %v785
    %v788 = vperm.slane %v50, 2
    %v789 = vmul.f32 %v786, %v788
    %v790 = vmul.f32 %v787, %v788
    %v791 = vperm.slane %v50, 3
    %v792 = vadd.f32 %v789, %v791
    %v793 = vadd.f32 %v790, %v791
    %v794 = vperm.slane %v50, 0
    %v796 = vsel %vm51, %v792, 0
    %v799 = vsel %vm51, %v793, 0
    %801 = vmatpush.msra.mxu0 0.0
    %802 = vmatpush.msra.mxu0 0.0
    %803 = vmatpush.msra.mxu0 0.0
    %804 = vmatpush.msra.mxu0 0.0
    %805 = vmatpush.msra.mxu0 0.0
    %806 = vmatpush.msra.mxu0 0.0
    %807 = vmatpush.msra.mxu0 0.0
    %808 = vmatpush.msra.mxu0 0.0
    %809 = vmatpush.msra.mxu0 0.0
    %810 = vmatpush.msra.mxu0 0.0
    %811 = vmatpush.msra.mxu0 0.0
    %812 = vmatpush.msra.mxu0 0.0
    %813 = vmatpush.msra.mxu0 %v45
    %814 = vmatpush.msra.mxu0 %v44
    %815 = vmatpush.msra.mxu0 %v43
    %816 = vmatpush.msra.mxu0 %v42
    %817 = vmatmul.f32.gmra.mxu0 %v796
    %v818 = vpop.f32.mrf.mxu0
    %v819 = vadd.f32 %v794, %v818
    %820 = vmatmul.f32.gmra.mxu0 %v799
    %v821 = vpop.f32.mrf.mxu0
    %v822 = vadd.f32 %v794, %v821
    %823 = vdwg.mxu0
    %v824 = vmax.f32 %v819, 0.0
    %v825 = vmax.f32 %v822, 0.0
    %v826 = vperm.slane %v50, 4
    %827 = vmatpush.xpose.msra.mxu0 0.0
    %828 = vmatpush.xpose.msra.mxu0 0.0
    %829 = vmatpush.xpose.msra.mxu0 0.0
    %830 = vmatpush.xpose.msra.mxu0 0.0
    %831 = vmatpush.xpose.msra.mxu0 0.0
    %832 = vmatpush.xpose.msra.mxu0 0.0
    %833 = vmatpush.xpose.msra.mxu0 0.0
    %834 = vmatpush.xpose.msra.mxu0 0.0
    %835 = vmatpush.xpose.msra.mxu0 0.0
    %836 = vmatpush.xpose.msra.mxu0 0.0
    %837 = vmatpush.xpose.msra.mxu0 0.0
    %838 = vmatpush.xpose.msra.mxu0 0.0
    %839 = vmatpush.xpose.msra.mxu0 %v49
    %840 = vmatpush.xpose.msra.mxu0 %v48
    %841 = vmatpush.xpose.msra.mxu0 %v47
    %842 = vmatpush.xpose.msra.mxu0 %v46
    %843 = vmatmul.f32.gmra.mxu0 %v824
    %v844 = vpop.f32.mrf.mxu0
    %v845 = vadd.f32 %v826, %v844
    %846 = vmatmul.f32.gmra.mxu0 %v825
    %v847 = vpop.f32.mrf.mxu0
    %v848 = vadd.f32 %v826, %v847
    %849 = vdwg.mxu0
    %v850 = vadd.f32 %v845, %v792
    %v851 = vadd.f32 %v848, %v793
    %v852 = vsel %vm51, %v850, 0.0
    %853 = vadd.xlane.f32.xlu0 %v852
    %v854 = vpop.xlane.xlu0 %853
    %v855 = vsel %vm51, %v851, 0.0
    %856 = vadd.xlane.f32.xlu0 %v855
    %v857 = vpop.xlane.xlu0 %856
    %v858 = vmul.f32 %v854, %v749
    %v859 = vmul.f32 %v857, %v749
    %v860 = vsub.f32 %v850, %v858
    %v861 = vsub.f32 %v851, %v859
    %v862 = vmul.f32 %v860, %v860
    %v863 = vmul.f32 %v861, %v861
    %v864 = vsel %vm51, %v862, 0.0
    %865 = vadd.xlane.f32.xlu0 %v864
    %v866 = vpop.xlane.xlu0 %865
    %v867 = vsel %vm51, %v863, 0.0
    %868 = vadd.xlane.f32.xlu0 %v867
    %v869 = vpop.xlane.xlu0 %868
    %v870 = vmul.f32 %v866, %v749
    %v871 = vmul.f32 %v869, %v749
    %v872 = vadd.f32 %v870, 1e-05
    %v873 = vadd.f32 %v871, 1e-05
    %v874 = vrsqrt.pop %v872
    %v875 = vmul.f32 %v874, %v872
    %v876 = vmul.f32 %v875, %v874
    %v877 = vmul.f32 0.5, %v876
    %v878 = vsub.f32 1.5, %v877
    %v879 = vmul.f32 %v874, %v878
    %vm880 = vweird.f32 %v872
    %vm881 = vweird.f32 %v874
    %vm882 = vmor %vm880, %vm881
    %v883 = vsel %vm882, %v874, %v879
    %v884 = vrsqrt.pop %v873
    %v885 = vmul.f32 %v884, %v873
    %v886 = vmul.f32 %v885, %v884
    %v887 = vmul.f32 0.5, %v886
    %v888 = vsub.f32 1.5, %v887
    %v889 = vmul.f32 %v884, %v888
    %vm890 = vweird.f32 %v873
    %vm891 = vweird.f32 %v884
    %vm892 = vmor %vm890, %vm891
    %v893 = vsel %vm892, %v884, %v889
    %v894 = vmul.f32 %v860, %v883
    %v895 = vmul.f32 %v861, %v893
    %v896 = vperm.slane %v50, 5
    %v897 = vmul.f32 %v894, %v896
    %v898 = vmul.f32 %v895, %v896
    %v899 = vperm.slane %v50, 6
    %v900 = vadd.f32 %v897, %v899
    %v901 = vadd.f32 %v898, %v899
    %902 = vst.msk [vmem:[#allocation2] sm:$0xff] %vm51, %v900
    %903 = vst.msk [vmem:[#allocation2 + $0x8] sm:$0xff] %vm51, %v901
    // Predicated region
    $region26: #{transformer_block.1} parent=1 // pred_check
      _
    $region27: #{transformer_block.1} parent=1 // pred_check_branch
      %905 = sbr.rel (0) target = $region29
    $region28: #{transformer_block.1} parent=1 // pred_region
      %907 = vsyncadd [#allocation3], 0
      %s908 = sshll.u32 [#allocation2], 4
      %s909 = int_to_ptr.vmem [resolvable:$true] %s908
      %s910 = sshll.u32 %s6, 4
      %s911 = int_to_ptr.hbm [resolvable:$true] %s910
      %916 = dma.vmem_to_hbm [thread:$0]  %s909, 256, %s911, [#allocation3], 128, 128, 8
    $region29: #{transformer_block.1} parent=1 // pred_fallthru
      _
    // Predicated region
    $region30: #{transformer_block.1} parent=1 // pred_check
      _
    $region31: #{transformer_block.1} parent=1 // pred_check_branch
      %918 = sbr.rel (0) target = $region33
    $region32: #{transformer_block.1} parent=1 // pred_region
      %920 = dma.done [#allocation3], 256
    $region33: #{transformer_block.1} parent=1 // pred_fallthru
      _
    %921 = vsyncpa [#allocation3], 1

</llo_original>
